<compile_context>
chip_gen: v7x
topology: tpu7x:2x2x1
jax: 0.10.0
libtpu: 0.0.40
codegen_flags: <defaults>
</compile_context>

<pallas_src>
import functools

import jax
import jax.numpy as jnp
from jax import lax
from jax.experimental import pallas as pl
from jax.experimental.pallas import tpu as pltpu


# ------------------------------ tiling helpers ------------------------------ #

_MIB = 1024 * 1024
_PREF_K = 1024                       # reduction tile; >= 512 is enough to hide acc RMW
_FROW_RESIDENT_BYTES = 12 * _MIB     # VMEM allowance for a resident (tm, K) row panel


def _pick_tile(dim, preferred, align):
    """Largest tile <= preferred that divides dim and is `align`-aligned, else full dim."""
    if dim <= preferred:
        return dim
    t = (preferred // align) * align
    while t >= align:
        if dim % t == 0:
            return t
        t -= align
    return dim


@functools.lru_cache(maxsize=None)
def _vmem_budget_bytes():
    """3/4 of physical VMEM: ~48 MiB on v7x (64 MiB/TC), ~96 MiB on v5e/v6e (128 MiB)."""
    try:
        cap = int(pltpu.get_tpu_info().vmem_capacity_bytes)
    except Exception:
        cap = 64 * _MIB              # conservative fallback (v7x-sized)
    return (3 * cap) // 4


def _vmem_limit(footprint_bytes):
    """Footprint-derived scoped-VMEM request with headroom, never above the budget."""
    return int(min(_vmem_budget_bytes(), max(32 * _MIB, 2 * footprint_bytes)))


def _tile_m_cap_default():
    """Output-tile cap: 1024 on 128 MiB-VMEM parts (v5e/v6e), 512 on v7x."""
    return 1024 if _vmem_budget_bytes() >= 96 * _MIB else 512


def _prep_features(x, feature_dtype, m_tile_cap):
    """(B,C,H,W) -> (B*H, W*C) features; optional low-precision cast; zero-pad awkward
    dims to multiples of 128 so _pick_tile never falls back to an oversized full-dim
    block (loss-neutral: padded rows/cols of F contribute exact zeros)."""
    b, c, h, w = x.shape
    m, kdim = b * h, w * c
    feats = x.reshape(m, kdim)
    if feature_dtype is not None and feats.dtype != jnp.dtype(feature_dtype):
        feats = feats.astype(feature_dtype)
    pad_m = (-m) % 128 if (m > m_tile_cap and m % 128 != 0) else 0
    pad_k = (-kdim) % 128 if (kdim > _PREF_K and kdim % 128 != 0) else 0
    if pad_m or pad_k:
        feats = jnp.pad(feats, ((0, pad_m), (0, pad_k)))
    return feats


# ------------------------------ kernels ------------------------------------- #

def _gram_kernel(frow_ref, fcol_ref, g_ref, *, inv_denom):
    """One (i, j) tile of G = F @ F.T / denom; accumulates directly into the
    k-resident output block (no scratch)."""
    k = pl.program_id(2)

    @pl.when(k == 0)
    def _():
        g_ref[...] = jnp.zeros_like(g_ref)

    g_ref[...] += lax.dot_general(
        frow_ref[...], fcol_ref[...],
        dimension_numbers=(((1,), (1,)), ((), ())),          # F_i @ F_j.T, no transpose copy
        preferred_element_type=jnp.float32,
    )

    @pl.when(k == pl.num_programs(2) - 1)
    def _():
        g_ref[...] = g_ref[...] * inv_denom


def _gram_accum_kernel(feat_ref, g_ref, *, inv_denom):
    """Small-M path: the whole Gram is a single tile. One operand serves as both lhs
    and rhs (no duplicate F DMA); the leading grid axis splits K across TensorCores,
    each writing its own partial Gram block (combined outside in JAX)."""
    k = pl.program_id(1)

    @pl.when(k == 0)
    def _():
        g_ref[...] = jnp.zeros_like(g_ref)

    f = feat_ref[...]
    g_ref[...] += lax.dot_general(
        f, f, dimension_numbers=(((1,), (1,)), ((), ())),
        preferred_element_type=jnp.float32,
    )

    @pl.when(k == pl.num_programs(1) - 1)
    def _():
        g_ref[...] = g_ref[...] * inv_denom


def _style_loss_kernel(i_idx_ref, j_idx_ref,              # scalar-prefetch (index_maps only)
                       frow_ref, fcol_ref, t1_ref, t2_ref,
                       p1_ref, p2_ref,                    # per-tile partial sums, (8,128)
                       acc_ref, *, inv_gram_denom, tk, slice_frow):
    """Fused forward for one upper-triangular Gram tile: matmul-accumulate over k,
    then (at k==last) scale, subtract both targets and emit sum-of-squared-diffs."""
    del i_idx_ref, j_idx_ref                              # consumed by the index_maps only
    k = pl.program_id(1)

    @pl.when(k == 0)
    def _():
        acc_ref[...] = jnp.zeros_like(acc_ref)

    if slice_frow:
        # frow holds the full (tm, K) row panel resident in VMEM; take this step's slab.
        off = pl.multiple_of(k * tk, tk)
        a = frow_ref[:, pl.ds(off, tk)]
    else:
        a = frow_ref[...]
    acc_ref[...] += lax.dot_general(
        a, fcol_ref[...],
        dimension_numbers=(((1,), (1,)), ((), ())),
        preferred_element_type=jnp.float32,
    )

    @pl.when(k == pl.num_programs(1) - 1)
    def _():
        g = acc_ref[...] * inv_gram_denom
        d1 = g - t1_ref[...].astype(jnp.float32)
        d2 = g - t2_ref[...].astype(jnp.float32)
        s1 = jnp.sum(d1 * d1, axis=(0, 1), keepdims=True)  # (1, 1) per-tile partial
        s2 = jnp.sum(d2 * d2, axis=(0, 1), keepdims=True)
        # lane-dense full-block stores (no masked (1,1) vst); reduced outside in JAX
        p1_ref[...] = jnp.broadcast_to(s1, p1_ref.shape)
        p2_ref[...] = jnp.broadcast_to(s2, p2_ref.shape)


# ------------------------------ wrappers ------------------------------------- #

def gram_matrix(x):
    """Pallas equivalent of the PyTorch gram_matrix helper. x: (B, C, H, W) -> (B*H, B*H)."""
    b, c, h, w = x.shape
    m, kdim = b * h, w * c
    cap = _tile_m_cap_default()
    feats = _prep_features(x, feature_dtype=None, m_tile_cap=cap)   # keep f32: init-only targets
    mp, kp = feats.shape
    tm = _pick_tile(mp, cap, 128)
    tk = _pick_tile(kp, _PREF_K, 128)
    nm, nk = mp // tm, kp // tk
    isz = feats.dtype.itemsize
    footprint = 2 * 2 * tm * tk * isz + 2 * tm * tm * 4
    g = pl.pallas_call(
        functools.partial(_gram_kernel, inv_denom=1.0 / float(m * kdim)),
        grid=(nm, nm, nk),
        in_specs=[
            pl.BlockSpec((tm, tk), lambda i, j, k: (i, k)),
            pl.BlockSpec((tm, tk), lambda i, j, k: (j, k)),
        ],
        out_specs=pl.BlockSpec((tm, tm), lambda i, j, k: (i, j)),
        out_shape=jax.ShapeDtypeStruct((mp, mp), jnp.float32),
        compiler_params=pltpu.CompilerParams(
            dimension_semantics=("parallel", "parallel", "arbitrary"),
            vmem_limit_bytes=_vmem_limit(footprint),
        ),
    )(feats, feats)
    return g[:m, :m] if mp != m else g


def _style_loss_small_m(feats, target1, target2, m, kdim, tk):
    """m fits one tile: compute (partial) Gram blocks in Pallas (K split across cores when
    possible), combine + MSE in JAX — the Gram here is tiny and the MSE is O(m^2)."""
    mp, kp = feats.shape
    nk = kp // tk
    ksplit = 2 if (nk >= 2 and nk % 2 == 0) else 1      # megacore work split when nm == 1
    nkk = nk // ksplit
    footprint = 2 * mp * tk * feats.dtype.itemsize + 2 * mp * mp * 4

    partials = pl.pallas_call(
        functools.partial(_gram_accum_kernel, inv_denom=1.0 / float(m * kdim)),
        grid=(ksplit, nkk),
        in_specs=[pl.BlockSpec((mp, tk), lambda c, k: (0, c * nkk + k))],
        out_specs=pl.BlockSpec((None, mp, mp), lambda c, k: (c, 0, 0)),
        out_shape=jax.ShapeDtypeStruct((ksplit, mp, mp), jnp.float32),
        compiler_params=pltpu.CompilerParams(
            dimension_semantics=("parallel", "arbitrary"),
            vmem_limit_bytes=_vmem_limit(footprint),
        ),
    )(feats)

    g = jnp.sum(partials, axis=0)
    d1 = g - target1.astype(jnp.float32)
    d2 = g - target2.astype(jnp.float32)
    return jnp.mean(d1 * d1), jnp.mean(d2 * d2)


def _style_loss_tiled(feats, t1, t2, m, kdim, tm, tk):
    """General path: fused Gram+MSE over the upper-triangular tile schedule; the M x M
    Gram is never written to HBM (only tiny per-tile partial sums are)."""
    mp, kp = feats.shape
    nm, nk = mp // tm, kp // tk
    pairs = [(i, j) for i in range(nm) for j in range(i, nm)]   # Gram symmetry: j >= i only
    ntiles = len(pairs)
    i_idx = jnp.asarray([p[0] for p in pairs], dtype=jnp.int32)
    j_idx = jnp.asarray([p[1] for p in pairs], dtype=jnp.int32)
    isz = feats.dtype.itemsize
    tisz = t1.dtype.itemsize

    # Row-panel reuse: if the (tm, K) panel fits the budget, make its BlockSpec
    # k-independent so Pallas keeps it resident across all j-tiles sharing the same i.
    frow_resident = 2 * tm * kp * isz <= _FROW_RESIDENT_BYTES
    if frow_resident:
        frow_spec = pl.BlockSpec((tm, kp), lambda t, k, ii, jj: (ii[t], 0))
        frow_vmem = 2 * tm * kp * isz
    else:
        frow_spec = pl.BlockSpec((tm, tk), lambda t, k, ii, jj: (ii[t], k))
        frow_vmem = 2 * tm * tk * isz

    footprint = (frow_vmem + 2 * tm * tk * isz        # F panels (double-buffered)
                 + 2 * 2 * tm * tm * tisz             # both targets (read in epilogue only)
                 + tm * tm * 4                        # f32 accumulator scratch
                 + 2 * 2 * 8 * 128 * 4)               # partial-sum outputs
    # NOTE: on 64 MiB-VMEM parts the target blocks could also be single-buffered
    # (pipeline_mode=pl.Buffered(1)) since they are only read in the k==last epilogue.

    frow_hbm = (nm if frow_resident else ntiles) * tm * kp * isz
    cost = pl.CostEstimate(
        flops=2 * ntiles * tm * tm * kp,
        transcendentals=0,
        bytes_accessed=int(frow_hbm + ntiles * tm * kp * isz
                           + 2 * ntiles * tm * tm * tisz + 2 * ntiles * 8 * 128 * 4),
    )

    grid_spec = pltpu.PrefetchScalarGridSpec(
        num_scalar_prefetch=2,
        grid=(ntiles, nk),                                                # k (reduction) innermost
        in_specs=[
            frow_spec,                                                    # F rows
            pl.BlockSpec((tm, tk), lambda t, k, ii, jj: (jj[t], k)),      # F cols
            pl.BlockSpec((tm, tm), lambda t, k, ii, jj: (ii[t], jj[t])),  # target1 (k-indep)
            pl.BlockSpec((tm, tm), lambda t, k, ii, jj: (ii[t], jj[t])),  # target2 (k-indep)
        ],
        out_specs=(
            pl.BlockSpec((8, 128), lambda t, k, ii, jj: (t, 0)),
            pl.BlockSpec((8, 128), lambda t, k, ii, jj: (t, 0)),
        ),
        scratch_shapes=[pltpu.VMEM((tm, tm), jnp.float32)],
    )

    p1, p2 = pl.pallas_call(
        functools.partial(_style_loss_kernel,
                          inv_gram_denom=1.0 / float(m * kdim),
                          tk=tk,
                          slice_frow=frow_resident and nk > 1),
        grid_spec=grid_spec,
        out_shape=(jax.ShapeDtypeStruct((8 * ntiles, 128), jnp.float32),
                   jax.ShapeDtypeStruct((8 * ntiles, 128), jnp.float32)),
        compiler_params=pltpu.CompilerParams(
            dimension_semantics=("parallel", "arbitrary"),
            vmem_limit_bytes=_vmem_limit(footprint),
        ),
        cost_estimate=cost,
    )(i_idx, j_idx, feats, feats, t1, t2)

    # One value per tile (each tile broadcast its sum over an (8,128) block); weight
    # off-diagonal tiles x2 (Gram symmetry), normalize by the global M*M.
    wgt = jnp.where(i_idx == j_idx, 1.0, 2.0).astype(jnp.float32)
    inv_mse = 1.0 / float(m * m)
    loss1 = jnp.sum(p1[::8, 0] * wgt) * inv_mse
    loss2 = jnp.sum(p2[::8, 0] * wgt) * inv_mse
    return loss1, loss2


def style_loss_forward(x, target1, target2, *, feature_dtype=jnp.bfloat16, tile_m_cap=None):
    """Returns (mse(gram(x), target1), mse(gram(x), target2)).  The full Gram matrix is
    only materialized on the small-M fast path (where it is <= a few MiB)."""
    b, c, h, w = x.shape
    m, kdim = b * h, w * c
    if tile_m_cap is None:
        tile_m_cap = _tile_m_cap_default()
    feats = _prep_features(x, feature_dtype, tile_m_cap)
    mp, kp = feats.shape
    tm = _pick_tile(mp, tile_m_cap, 128)
    tk = _pick_tile(kp, _PREF_K, 128)

    if tm == mp:                                        # Gram fits in a single output tile
        return _style_loss_small_m(feats, target1, target2, m, kdim, tk)

    t1, t2 = target1, target2
    if mp != m:   # zero-pad targets to the padded Gram extent (pad region contributes 0)
        padw = ((0, mp - m), (0, mp - m))
        t1, t2 = jnp.pad(t1, padw), jnp.pad(t2, padw)
    return _style_loss_tiled(feats, t1, t2, m, kdim, tm, tk)


class StyleLoss2:
    """JAX/Pallas port of the PyTorch StyleLoss2 module (forward pass only).

    feature_dtype=jnp.bfloat16 halves the dominant HBM stream of the forward Gram
    matmul (MXU-native on v5e/v6e/v7x) while keeping f32 accumulation; pass
    feature_dtype=None to keep full-precision f32 feature streams.
    """

    def __init__(self, target_feature1, target_feature2, *, feature_dtype=jnp.bfloat16):
        self.feature_dtype = feature_dtype
        self.target1 = gram_matrix(target_feature1)     # f32, computed once in __init__
        self.target2 = gram_matrix(target_feature2)
        # mse(t, t) == 0, mirroring the PyTorch __init__
        self.loss1 = jnp.float32(0.0)
        self.loss2 = jnp.float32(0.0)
        self.loss = self.loss1 + self.loss2

    def __call__(self, input1):
        l1, l2 = style_loss_forward(input1, self.target1, self.target2,
                                    feature_dtype=self.feature_dtype)
        self.loss1, self.loss2, self.loss = l1, l2, l1 + l2
        return input1                                    # forward returns its input unchanged


# ------------------------------ references (pure JAX) ------------------------ #

def _gram_ref(x):
    b, c, h, w = x.shape
    f32 = x.reshape(b * h, w * c).astype(jnp.float32)
    g = jnp.dot(f32, f32.T, precision=lax.Precision.HIGHEST)
    return g / float(b * c * h * w)


def _matched_loss_ref(x, t1, t2, feature_dtype):
    """Reference losses using the same feature-dtype policy as the kernel path."""
    b, c, h, w = x.shape
    f = x.reshape(b * h, w * c)
    if feature_dtype is not None:
        f = f.astype(feature_dtype)
    f = f.astype(jnp.float32)
    g = jnp.dot(f, f.T, precision=lax.Precision.HIGHEST) / float(b * c * h * w)
    return jnp.mean((g - t1) ** 2), jnp.mean((g - t2) ** 2)


def _assert_close(name, got, want, *, rtol, atol):
    ok = bool(jnp.allclose(jnp.asarray(got), jnp.asarray(want), rtol=rtol, atol=atol))
    assert ok, f"{name} mismatch: got={got}, want={want}"


# ------------------------------ main ----------------------------------------- #

if __name__ == "__main__":
    keys = jax.random.split(jax.random.PRNGKey(0), 9)

    # --- main demo: the module at the spec's small shape ----------------------
    B, C, H, W = 2, 4, 16, 16
    x = jax.random.normal(keys[0], (B, C, H, W), jnp.float32)
    tf1 = jax.random.normal(keys[1], (B, C, H, W), jnp.float32)
    tf2 = jax.random.normal(keys[2], (B, C, H, W), jnp.float32)

    module = StyleLoss2(tf1, tf2)
    out = module(x)
    jax.block_until_ready((out, module.loss1, module.loss2, module.loss))

    assert out.shape == x.shape and bool(jnp.all(out == x))
    _assert_close("target1", module.target1, _gram_ref(tf1), rtol=1e-4, atol=1e-5)
    _assert_close("target2", module.target2, _gram_ref(tf2), rtol=1e-4, atol=1e-5)

    # tight check vs. a reference with the same bf16 feature policy
    r1, r2 = _matched_loss_ref(x, module.target1, module.target2, jnp.bfloat16)
    _assert_close("loss1", module.loss1, r1, rtol=5e-3, atol=1e-10)
    _assert_close("loss2", module.loss2, r2, rtol=5e-3, atol=1e-10)
    # loose check vs. the pure-f32 PyTorch-equivalent reference (bf16 feature cast)
    f1 = jnp.mean((_gram_ref(x) - _gram_ref(tf1)) ** 2)
    f2 = jnp.mean((_gram_ref(x) - _gram_ref(tf2)) ** 2)
    _assert_close("loss1_vs_f32", module.loss1, f1, rtol=2e-2, atol=1e-8)
    _assert_close("loss2_vs_f32", module.loss2, f2, rtol=2e-2, atol=1e-8)
    _assert_close("loss_sum", module.loss, r1 + r2, rtol=5e-3, atol=1e-10)

    # --- coverage: tiled triangular fused-loss kernel (nm > 1) ----------------
    x2 = jax.random.normal(keys[3], (2, 4, 128, 16), jnp.float32)
    s21 = jax.random.normal(keys[4], (2, 4, 128, 16), jnp.float32)
    s22 = jax.random.normal(keys[5], (2, 4, 128, 16), jnp.float32)
    t21, t22 = gram_matrix(s21), gram_matrix(s22)
    l1b, l2b = style_loss_forward(x2, t21, t22, tile_m_cap=128)
    r1b, r2b = _matched_loss_ref(x2, t21, t22, jnp.bfloat16)
    _assert_close("tiled_loss1", l1b, r1b, rtol=5e-3, atol=1e-10)
    _assert_close("tiled_loss2", l2b, r2b, rtol=5e-3, atol=1e-10)

    # --- coverage: small-M path with K-split (nk == 2 -> both TCs get work) ---
    x3 = jax.random.normal(keys[6], (2, 64, 16, 32), jnp.float32)
    s31 = jax.random.normal(keys[7], (2, 64, 16, 32), jnp.float32)
    s32 = jax.random.normal(keys[8], (2, 64, 16, 32), jnp.float32)
    t31, t32 = gram_matrix(s31), gram_matrix(s32)
    l1c, l2c = style_loss_forward(x3, t31, t32)
    r1c, r2c = _matched_loss_ref(x3, t31, t32, jnp.bfloat16)
    _assert_close("ksplit_loss1", l1c, r1c, rtol=5e-3, atol=1e-10)
    _assert_close("ksplit_loss2", l2c, r2c, rtol=5e-3, atol=1e-10)

    print("KERNEL_OK")
</pallas_src>

<mosaic_0001>
module attributes {stable_mosaic.version = 11 : i64} {
  func.func @_gram_kernel(%arg0: i32, %arg1: i32, %arg2: i32, %arg3: memref<32x64xf32, #tpu.memory_space<vmem>>, %arg4: memref<32x64xf32, #tpu.memory_space<vmem>>, %arg5: memref<32x32xf32, #tpu.memory_space<vmem>>) attributes {dimension_semantics = [#tpu.dimension_semantics<parallel>, #tpu.dimension_semantics<parallel>, #tpu.dimension_semantics<arbitrary>], iteration_bounds = array<i64: 1, 1, 1>, scalar_prefetch = 0 : i64, scratch_operands = 0 : i64, tpu.core_type = #tpu.core_type<tc>, window_params = [{transform_indices = @transform_0, window_bounds = array<i64: 32, 64>}, {transform_indices = @transform_1, window_bounds = array<i64: 32, 64>}, {transform_indices = @transform_2, window_bounds = array<i64: 32, 32>}]} {
    %c0_i32 = arith.constant 0 : i32
    %0 = arith.cmpi eq, %arg2, %c0_i32 : i32
    %1 = arith.extui %0 : i1 to i32
    %c0_i32_0 = arith.constant 0 : i32
    %2 = arith.cmpi ne, %1, %c0_i32_0 : i32
    scf.if %2 {
      %cst_10 = arith.constant 0.000000e+00 : f32
      %12 = vector.broadcast %cst_10 : f32 to vector<32x32xf32>
      %c0_11 = arith.constant 0 : index
      %c0_12 = arith.constant 0 : index
      %13 = vector.load %arg5[%c0_11, %c0_12] : memref<32x32xf32, #tpu.memory_space<vmem>>, vector<32x32xf32>
      tpu.vector_store %arg5[%c0_11, %c0_12], %12 {strides = array<i32>} : memref<32x32xf32, #tpu.memory_space<vmem>>, vector<32x32xf32>,
    } else {
    }
    %c0 = arith.constant 0 : index
    %c0_1 = arith.constant 0 : index
    %3 = vector.load %arg5[%c0, %c0_1] : memref<32x32xf32, #tpu.memory_space<vmem>>, vector<32x32xf32>
    %c0_2 = arith.constant 0 : index
    %c0_3 = arith.constant 0 : index
    %4 = vector.load %arg3[%c0_2, %c0_3] : memref<32x64xf32, #tpu.memory_space<vmem>>, vector<32x64xf32>
    %c0_4 = arith.constant 0 : index
    %c0_5 = arith.constant 0 : index
    %5 = vector.load %arg4[%c0_4, %c0_5] : memref<32x64xf32, #tpu.memory_space<vmem>>, vector<32x64xf32>
    %cst = arith.constant dense<0.000000e+00> : vector<32x32xf32>
    %6 = tpu.matmul %4, %5, %cst {dimension_numbers = #tpu.dot_dimension_numbers<[1], [1], [0], [0], [0, 0, 1, 0], [], []>} : vector<32x64xf32>, vector<32x64xf32>, vector<32x32xf32> -> vector<32x32xf32>
    %7 = arith.addf %3, %6 : vector<32x32xf32>
    %c0_6 = arith.constant 0 : index
    %c0_7 = arith.constant 0 : index
    %8 = vector.load %arg5[%c0_6, %c0_7] : memref<32x32xf32, #tpu.memory_space<vmem>>, vector<32x32xf32>
    tpu.vector_store %arg5[%c0_6, %c0_7], %7 {strides = array<i32>} : memref<32x32xf32, #tpu.memory_space<vmem>>, vector<32x32xf32>,
    %c0_i32_8 = arith.constant 0 : i32
    %9 = arith.cmpi eq, %arg2, %c0_i32_8 : i32
    %10 = arith.extui %9 : i1 to i32
    %c0_i32_9 = arith.constant 0 : i32
    %11 = arith.cmpi ne, %10, %c0_i32_9 : i32
    scf.if %11 {
      %c0_10 = arith.constant 0 : index
      %c0_11 = arith.constant 0 : index
      %12 = vector.load %arg5[%c0_10, %c0_11] : memref<32x32xf32, #tpu.memory_space<vmem>>, vector<32x32xf32>
      %cst_12 = arith.constant 4.8828125E-4 : f32
      %13 = vector.broadcast %cst_12 : f32 to vector<32x32xf32>
      %14 = arith.mulf %12, %13 : vector<32x32xf32>
      %c0_13 = arith.constant 0 : index
      %c0_14 = arith.constant 0 : index
      %15 = vector.load %arg5[%c0_13, %c0_14] : memref<32x32xf32, #tpu.memory_space<vmem>>, vector<32x32xf32>
      tpu.vector_store %arg5[%c0_13, %c0_14], %14 {strides = array<i32>} : memref<32x32xf32, #tpu.memory_space<vmem>>, vector<32x32xf32>,
    } else {
    }
    return
  }
  func.func @transform_0(%arg0: i32, %arg1: i32, %arg2: i32) -> (i32, i32) {
    %c0_i32 = arith.constant 0 : i32
    return %arg0, %arg2 : i32, i32
  }
  func.func @transform_1(%arg0: i32, %arg1: i32, %arg2: i32) -> (i32, i32) {
    %c0_i32 = arith.constant 0 : i32
    return %arg1, %arg2 : i32, i32
  }
  func.func @transform_2(%arg0: i32, %arg1: i32, %arg2: i32) -> (i32, i32) {
    %c0_i32 = arith.constant 0 : i32
    return %arg0, %arg1 : i32, i32
  }
}

</mosaic_0001>

<llo_original>
// kernel: tpu_custom_call.1
$region0: #{tpu_custom_call.1}
  #allocation0 [shape = 'u32[]', space=smem, size = 0x4, offset = 0x4, fixed_abs, tag = 'smem constant byte address 0x4 - core index']
  #allocation1 [shape = 'u32[144,128]{1,0:T(1,128)}', space=vmem, size = 0x12000, scoped, tag = 'internal scratch']
  %s0 = inlined_call_operand.hbm [shape: f32[32,64], index: 0, kind: input, shape index: {}]
  %s1 = inlined_call_operand.hbm [shape: f32[32,64], index: 1, kind: input, shape index: {}]
  %s2 = inlined_call_operand.hbm [shape: f32[32,32], index: 2, kind: output, shape index: {}]
  %s3 = sld [smem:[#allocation0]]
  $region34: #{tpu_custom_call.1} parent=0
    _
  %s5 = ssub.s32 1, %s3
  %s6 = scalar_select 0, %s5, %s3
  $region1: #{tpu_custom_call.1} parent=0
    #allocation2 [shape = 'u8[16384]{0}', space=vmem, size = 0x4000, scoped, tag = 'input window, operand 0, single buffered']
    #allocation3 [shape = 's32[1]{0}', space=sflag, size = 0x4, scoped, tag = 'scoped memory for tpu_custom_call.1']
    #allocation4 [shape = 's32[1]{0}', space=sflag, size = 0x4, scoped, tag = 'scoped memory for tpu_custom_call.1']
    #allocation5 [shape = 'u8[16384]{0}', space=vmem, size = 0x4000, scoped, tag = 'input window, operand 1, single buffered']
    #allocation6 [shape = 's32[1]{0}', space=sflag, size = 0x4, scoped, tag = 'scoped memory for tpu_custom_call.1']
    #allocation7 [shape = 'u8[16384]{0}', space=vmem, size = 0x4000, scoped, tag = 'output window, operand 0, single buffered']
    %7 = vsyncpa [#allocation3], 0
    %8 = vsyncpa [#allocation6], 0
    %9 = vsyncpa [#allocation4], 0
    // Predicated region
    $region2: #{tpu_custom_call.1} parent=1 // pred_check
      _
    $region3: #{tpu_custom_call.1} parent=1 // pred_check_branch
      %11 = sbr.rel (0) target = $region5
    $region4: #{tpu_custom_call.1} parent=1 // pred_region
      %s13 = ssub.s32 512, 512
      %14 = vsyncadd [#allocation3], %s13
      %s15 = sshll.u32 [#allocation2], 4
      %s16 = int_to_ptr.vmem [resolvable:$true] %s15
      %21 = dma.hbm_to_vmem [thread:$0]  %s0, 512, %s16, [#allocation3], 128, 128, 8
    $region5: #{tpu_custom_call.1} parent=1 // pred_fallthru
      _
    // Predicated region
    $region6: #{tpu_custom_call.1} parent=1 // pred_check
      _
    $region7: #{tpu_custom_call.1} parent=1 // pred_check_branch
      %23 = sbr.rel (0) target = $region9
    $region8: #{tpu_custom_call.1} parent=1 // pred_region
      %s25 = ssub.s32 512, 512
      %26 = vsyncadd [#allocation6], %s25
      %s27 = sshll.u32 [#allocation5], 4
      %s28 = int_to_ptr.vmem [resolvable:$true] %s27
      %33 = dma.hbm_to_vmem [thread:$0]  %s1, 512, %s28, [#allocation6], 128, 128, 8
    $region9: #{tpu_custom_call.1} parent=1 // pred_fallthru
      _
    // Predicated region
    $region10: #{tpu_custom_call.1} parent=1 // pred_check
      _
    $region11: #{tpu_custom_call.1} parent=1 // pred_check_branch
      %35 = sbr.rel (0) target = $region13
    $region12: #{tpu_custom_call.1} parent=1 // pred_region
      %36 = dma.done [#allocation3], 512
    $region13: #{tpu_custom_call.1} parent=1 // pred_fallthru
      _
    // Predicated region
    $region14: #{tpu_custom_call.1} parent=1 // pred_check
      _
    $region15: #{tpu_custom_call.1} parent=1 // pred_check_branch
      %38 = sbr.rel (0) target = $region17
    $region16: #{tpu_custom_call.1} parent=1 // pred_region
      %39 = dma.done [#allocation6], 512
    $region17: #{tpu_custom_call.1} parent=1 // pred_fallthru
      _
    %p40 = scmp.eq.s32.totalorder 0, 0
    // Predicated region
    $region18: #{tpu_custom_call.1} parent=1 // pred_check
      %p41 = pneg %p40
    $region19: #{tpu_custom_call.1} parent=1 // pred_check_branch
      %43 = sbr.rel (%p41) target = $region21
    $region20: #{tpu_custom_call.1} parent=1 // pred_region
      %vm44 = vcmask 261120
      %45 = vst.msk [vmem:[#allocation7] sm:$0xff] %vm44, 0.0
      %46 = vst.msk [vmem:[#allocation7 + $0x8] sm:$0xff] %vm44, 0.0
      %47 = vst.msk [vmem:[#allocation7 + $0x10] sm:$0xff] %vm44, 0.0
      %48 = vst.msk [vmem:[#allocation7 + $0x18] sm:$0xff] %vm44, 0.0
    $region21: #{tpu_custom_call.1} parent=1 // pred_fallthru
      _
    %v49 = vld [vmem:[#allocation7] sm:$0xff]
    %v50 = vld [vmem:[#allocation7 + $0x8] sm:$0xff]
    %v51 = vld [vmem:[#allocation7 + $0x10] sm:$0xff]
    %v52 = vld [vmem:[#allocation7 + $0x18] sm:$0xff]
    %v53 = vld [vmem:[#allocation2] sm:$0xff]
    %v54 = vld [vmem:[#allocation2 + $0x8] sm:$0xff]
    %v55 = vld [vmem:[#allocation2 + $0x10] sm:$0xff]
    %v56 = vld [vmem:[#allocation2 + $0x18] sm:$0xff]
    %v57 = vld [vmem:[#allocation5] sm:$0xff]
    %v58 = vld [vmem:[#allocation5 + $0x8] sm:$0xff]
    %v59 = vld [vmem:[#allocation5 + $0x10] sm:$0xff]
    %v60 = vld [vmem:[#allocation5 + $0x18] sm:$0xff]
    %vm61 = vcmask 523264
    %v63 = vsel %vm61, %v53, 0
    %v66 = vsel %vm61, %v54, 0
    %v69 = vsel %vm61, %v55, 0
    %v72 = vsel %vm61, %v56, 0
    %v75 = vsel %vm61, %v57, 0
    %v78 = vsel %vm61, %v58, 0
    %v81 = vsel %vm61, %v59, 0
    %v84 = vsel %vm61, %v60, 0
    %86 = vmatprep.subr.mxu0 0.0
    %87 = vmatpush1.xpose.msra.mxu0 %v75
    %88 = vmatprep.subr.mxu0 0.0
    %89 = vmatpush1.xpose.msra.mxu0 %v78
    %90 = vmatprep.subr.mxu0 0.0
    %91 = vmatpush1.xpose.msra.mxu0 %v81
    %92 = vmatprep.subr.mxu0 0.0
    %93 = vmatpush1.xpose.msra.mxu0 %v84
    %94 = vmatprep.subr.mxu0 0.0
    %95 = vmatpush1.xpose.msra.mxu0 0.0
    %96 = vmatprep.subr.mxu0 0.0
    %97 = vmatpush1.xpose.msra.mxu0 0.0
    %98 = vmatprep.subr.mxu0 0.0
    %99 = vmatpush1.xpose.msra.mxu0 0.0
    %100 = vmatprep.subr.mxu0 0.0
    %101 = vmatpush1.xpose.msra.mxu0 0.0
    %102 = vmatprep.subr.mxu0 0.0
    %103 = vmatpush1.xpose.msra.mxu0 0.0
    %104 = vmatprep.subr.mxu0 0.0
    %105 = vmatpush1.xpose.msra.mxu0 0.0
    %106 = vmatprep.subr.mxu0 0.0
    %107 = vmatpush1.xpose.msra.mxu0 0.0
    %108 = vmatprep.subr.mxu0 0.0
    %109 = vmatpush1.xpose.msra.mxu0 0.0
    %110 = vmatprep.subr.mxu0 0.0
    %111 = vmatpush1.xpose.msra.mxu0 0.0
    %112 = vmatprep.subr.mxu0 0.0
    %113 = vmatpush1.xpose.msra.mxu0 0.0
    %114 = vmatprep.subr.mxu0 0.0
    %115 = vmatpush1.xpose.msra.mxu0 0.0
    %116 = vmatprep.subr.mxu0 0.0
    %117 = vmatpush1.xpose.msra.mxu0 0.0
    %118 = vmatprep.subr.mxu0 0.0
    %119 = vmatpush1.xpose.msra.mxu0 0.0
    %120 = vmatprep.subr.mxu0 0.0
    %121 = vmatpush1.xpose.msra.mxu0 0.0
    %122 = vmatprep.subr.mxu0 0.0
    %123 = vmatpush1.xpose.msra.mxu0 0.0
    %124 = vmatprep.subr.mxu0 0.0
    %125 = vmatpush1.xpose.msra.mxu0 0.0
    %126 = vmatprep.subr.mxu0 0.0
    %127 = vmatpush1.xpose.msra.mxu0 0.0
    %128 = vmatprep.subr.mxu0 0.0
    %129 = vmatpush1.xpose.msra.mxu0 0.0
    %130 = vmatprep.subr.mxu0 0.0
    %131 = vmatpush1.xpose.msra.mxu0 0.0
    %132 = vmatprep.subr.mxu0 0.0
    %133 = vmatpush1.xpose.msra.mxu0 0.0
    %134 = vmatprep.subr.mxu0 0.0
    %135 = vmatpush1.xpose.msra.mxu0 0.0
    %136 = vmatprep.subr.mxu0 0.0
    %137 = vmatpush1.xpose.msra.mxu0 0.0
    %138 = vmatprep.subr.mxu0 0.0
    %139 = vmatpush1.xpose.msra.mxu0 0.0
    %140 = vmatprep.subr.mxu0 0.0
    %141 = vmatpush1.xpose.msra.mxu0 0.0
    %142 = vmatprep.subr.mxu0 0.0
    %143 = vmatpush1.xpose.msra.mxu0 0.0
    %144 = vmatprep.subr.mxu0 0.0
    %145 = vmatpush1.xpose.msra.mxu0 0.0
    %146 = vmatprep.subr.mxu0 0.0
    %147 = vmatpush1.xpose.msra.mxu0 0.0
    %148 = vmatprep.subr.mxu0 0.0
    %149 = vmatpush1.xpose.msra.mxu0 0.0
    %150 = vmatprep.mubr.f32.mxu0 0.0
    %151 = vmatmul.mubr.f32.gmra.mrb[0].mxu0 %v63
    %v152 = vpop.f32.mrb[0].mxu0
    %v153 = vadd.f32 0.0, %v152
    %v154 = vpop.f32.mrb[0].mxu0
    %155 = vmatprep.mubr.f32.mxu0 0.0
    %156 = vmatmul.mubr.f32.gmra.mrb[0].mxu0 %v66
    %v157 = vpop.f32.mrb[0].mxu0
    %v158 = vadd.f32 0.0, %v157
    %v159 = vpop.f32.mrb[0].mxu0
    %160 = vmatprep.mubr.f32.mxu0 0.0
    %161 = vmatmul.mubr.f32.gmra.mrb[0].mxu0 %v69
    %v162 = vpop.f32.mrb[0].mxu0
    %v163 = vadd.f32 0.0, %v162
    %v164 = vpop.f32.mrb[0].mxu0
    %165 = vmatprep.mubr.f32.mxu0 0.0
    %166 = vmatmul.mubr.f32.gmra.mrb[0].mxu0 %v72
    %v167 = vpop.f32.mrb[0].mxu0
    %v168 = vadd.f32 0.0, %v167
    %v169 = vpop.f32.mrb[0].mxu0
    %170 = vdwg.mxu0
    %v171 = vadd.f32 %v49, %v153
    %v172 = vadd.f32 %v50, %v158
    %v173 = vadd.f32 %v51, %v163
    %v174 = vadd.f32 %v52, %v168
    %vm175 = vcmask 261120
    %176 = vst.msk [vmem:[#allocation7] sm:$0xff] %vm175, %v171
    %177 = vst.msk [vmem:[#allocation7 + $0x8] sm:$0xff] %vm175, %v172
    %178 = vst.msk [vmem:[#allocation7 + $0x10] sm:$0xff] %vm175, %v173
    %179 = vst.msk [vmem:[#allocation7 + $0x18] sm:$0xff] %vm175, %v174
    // Predicated region
    $region22: #{tpu_custom_call.1} parent=1 // pred_check
      %p180 = pneg %p40
    $region23: #{tpu_custom_call.1} parent=1 // pred_check_branch
      %182 = sbr.rel (%p180) target = $region25
    $region24: #{tpu_custom_call.1} parent=1 // pred_region
      %v183 = vld [vmem:[#allocation7] sm:$0xff]
      %v184 = vld [vmem:[#allocation7 + $0x8] sm:$0xff]
      %v185 = vld [vmem:[#allocation7 + $0x10] sm:$0xff]
      %v186 = vld [vmem:[#allocation7 + $0x18] sm:$0xff]
      %v187 = vmul.f32 %v183, 0.00048828125
      %v188 = vmul.f32 %v184, 0.00048828125
      %v189 = vmul.f32 %v185, 0.00048828125
      %v190 = vmul.f32 %v186, 0.00048828125
      %191 = vst.msk [vmem:[#allocation7] sm:$0xff] %vm175, %v187
      %192 = vst.msk [vmem:[#allocation7 + $0x8] sm:$0xff] %vm175, %v188
      %193 = vst.msk [vmem:[#allocation7 + $0x10] sm:$0xff] %vm175, %v189
      %194 = vst.msk [vmem:[#allocation7 + $0x18] sm:$0xff] %vm175, %v190
    $region25: #{tpu_custom_call.1} parent=1 // pred_fallthru
      _
    // Predicated region
    $region26: #{tpu_custom_call.1} parent=1 // pred_check
      _
    $region27: #{tpu_custom_call.1} parent=1 // pred_check_branch
      %196 = sbr.rel (0) target = $region29
    $region28: #{tpu_custom_call.1} parent=1 // pred_region
      %s198 = ssub.s32 512, 512
      %199 = vsyncadd [#allocation4], %s198
      %s200 = sshll.u32 [#allocation7], 4
      %s201 = int_to_ptr.vmem [resolvable:$true] %s200
      %206 = dma.vmem_to_hbm [thread:$0]  %s201, 512, %s2, [#allocation4], 128, 128, 8
    $region29: #{tpu_custom_call.1} parent=1 // pred_fallthru
      _
    // Predicated region
    $region30: #{tpu_custom_call.1} parent=1 // pred_check
      _
    $region31: #{tpu_custom_call.1} parent=1 // pred_check_branch
      %208 = sbr.rel (0) target = $region33
    $region32: #{tpu_custom_call.1} parent=1 // pred_region
      %209 = dma.done [#allocation4], 512
    $region33: #{tpu_custom_call.1} parent=1 // pred_fallthru
      _
    %210 = vsyncpa [#allocation3], 1
    %211 = vsyncpa [#allocation6], 1
    %212 = vsyncpa [#allocation4], 1

</llo_original>
